<compile_context>
chip_gen: v7x
topology: tpu7x:2x2x1
jax: 0.10.0
libtpu: 0.0.40
codegen_flags: <defaults>
</compile_context>

<pallas_src>
import functools

import jax
import jax.numpy as jnp
from jax.experimental import pallas as pl
from jax.experimental.pallas import tpu as pltpu


def _lane_fold(x):
    """(tb, K*128) -> (tb, 128) lane-wise partial sums.

    Implemented as a tree of aligned 128-lane slices + adds: pure VALU
    vreg-column additions, no cross-lane (XLU) reduce and no relayout.
    Falls back to a cross-lane reduce + broadcast when the width is not a
    multiple of 128 (only happens for a single full-N tile)."""
    tb, w = x.shape
    if w == 128:
        return x
    if w % 128 != 0:
        s = jnp.sum(x, axis=-1, keepdims=True)            # (tb, 1)
        return jnp.broadcast_to(s, (tb, 128))
    chunks = [x[:, i * 128:(i + 1) * 128] for i in range(w // 128)]
    while len(chunks) > 1:
        nxt = [chunks[i] + chunks[i + 1] for i in range(0, len(chunks) - 1, 2)]
        if len(chunks) % 2:
            nxt.append(chunks[-1])
        chunks = nxt
    return chunks[0]


def _mcc_kernel(params_ref, src_ref, corr_ref, out_ref, *,
                n_points, tn, nn_per_chunk, needs_mask):
    """One (batch-block, N-chunk, N-tile) grid step.

    params_ref : (tb, 16)  cols 0..8 = R row-major, 9..11 = t, 12 = -0.5/sigma^2
    src_ref    : (tb, 3, tn)
    corr_ref   : (tb, 3, tn)
    out_ref    : (tb, 128) lane-wise partial sums of exp_error for this
                 (batch block, chunk); resident across the N-tile axis.
    """
    c_idx = pl.program_id(1)
    n_idx = pl.program_id(2)

    # Zero the accumulator on the first N tile of this (batch block, chunk).
    @pl.when(n_idx == 0)
    def _():
        out_ref[...] = jnp.zeros_like(out_ref)

    f32 = jnp.float32
    p = params_ref[...].astype(f32)                        # (tb, 16)
    src = src_ref[...].astype(f32)                         # (tb, 3, tn)
    corr = corr_ref[...].astype(f32)                       # (tb, 3, tn)

    s0 = src[:, 0, :]                                      # (tb, tn) channel slabs
    s1 = src[:, 1, :]
    s2 = src[:, 2, :]

    # Unrolled R @ src + t, fused into the squared-error accumulation.
    # Pure VPU work (scalar-broadcast FMAs); the MXU is never touched.
    err2 = None
    for c in range(3):
        gt_c = (p[:, 3 * c + 0][:, None] * s0
                + p[:, 3 * c + 1][:, None] * s1
                + p[:, 3 * c + 2][:, None] * s2
                + p[:, 9 + c][:, None])
        d = corr[:, c, :] - gt_c
        err2 = d * d if err2 is None else err2 + d * d

    error = jnp.sqrt(err2)                                 # (tb, tn)
    neg_inv = p[:, 12][:, None]                            # -0.5 / sigma^2
    exp_err = jnp.exp(error * neg_inv)                     # (tb, tn)

    if needs_mask:
        # Global (unclamped) N-tile index; masking only runs on edge /
        # duplicate-overflow tiles (pl.when cold path everywhere else).
        g = c_idx * nn_per_chunk + n_idx
        is_edge = (g + 1) * tn > n_points

        @pl.when(jnp.logical_not(is_edge))
        def _():
            out_ref[...] += _lane_fold(exp_err)

        @pl.when(is_edge)
        def _():
            lane = jax.lax.broadcasted_iota(jnp.int32, exp_err.shape, 1)
            masked = jnp.where(g * tn + lane < n_points, exp_err, 0.0)
            out_ref[...] += _lane_fold(masked)
    else:
        out_ref[...] += _lane_fold(exp_err)


@functools.partial(jax.jit, static_argnames=("tn_max",))
def mcc_loss_v2(src_k, R_gt, t_gt, src_corr, sigma_, *, tn_max=8192):
    """src_k, src_corr: (B, 3, N); R_gt: (B, 3, 3); t_gt: (B, 3); sigma_: (B,)."""
    B, C, N = src_k.shape
    assert C == 3 and src_corr.shape == (B, 3, N)
    f32 = jnp.float32

    # Per-batch constants packed into one small f32 array (B, 16).
    inv_2sig2 = 0.5 / (sigma_.astype(f32).reshape(B) ** 2)
    params = jnp.concatenate(
        [R_gt.astype(f32).reshape(B, 9),
         t_gt.astype(f32).reshape(B, 3),
         (-inv_2sig2).reshape(B, 1),                       # sign folded here
         jnp.zeros((B, 3), f32)], axis=1)                  # (B, 16)

    # Batch tiling: sublane-dense blocks (full B when small, 16 when large).
    if B <= 8:
        tb = B
    elif B < 16:
        tb = 8
    else:
        tb = 16
    nb = pl.cdiv(B, tb)
    b_pad = nb * tb
    if b_pad != B:
        # Only the tiny params array is padded; the big point tensors rely on
        # Pallas partial-block handling for the last batch block.
        params = jnp.pad(params, ((0, b_pad - B), (0, 0)))

    # Point tiling: full N when small, else lane-dense 8192-wide tiles.
    if N <= tn_max:
        tn = N
    else:
        assert tn_max % 128 == 0
        tn = tn_max
    nn = pl.cdiv(N, tn)

    # v7x: with a single batch block, split the N reduction into two
    # "parallel" chunks so both TensorCores get work (near no-op on v5e/v6e).
    n_chunks = 2 if (nb == 1 and nn >= 2) else 1
    nn_per_chunk = pl.cdiv(nn, n_chunks)
    has_overflow = n_chunks * nn_per_chunk > nn
    needs_mask = (n_chunks * nn_per_chunk * tn) != N

    def n_block(c, n):
        g = c * nn_per_chunk + n
        if has_overflow:
            # Duplicate tile for the odd tile count; fully masked in-kernel.
            g = jnp.minimum(g, nn - 1)
        return g

    kernel = functools.partial(_mcc_kernel, n_points=N, tn=tn,
                               nn_per_chunk=nn_per_chunk, needs_mask=needs_mask)

    itemsize = jnp.dtype(src_k.dtype).itemsize
    cost = pl.CostEstimate(
        flops=28 * B * N,                       # ~28 VPU ops per point
        transcendentals=2 * B * N,              # sqrt + exp
        bytes_accessed=(2 * 3 * B * N * itemsize
                        + b_pad * 16 * 4 + b_pad * n_chunks * 128 * 4))

    out = pl.pallas_call(
        kernel,
        out_shape=jax.ShapeDtypeStruct((b_pad, n_chunks * 128), f32),
        grid_spec=pltpu.PrefetchScalarGridSpec(
            num_scalar_prefetch=0,
            grid=(nb, n_chunks, nn_per_chunk),                  # reduction last
            in_specs=[
                pl.BlockSpec((tb, 16), lambda b, c, n: (b, 0)),           # params
                pl.BlockSpec((tb, 3, tn),
                             lambda b, c, n: (b, 0, n_block(c, n))),      # src_k
                pl.BlockSpec((tb, 3, tn),
                             lambda b, c, n: (b, 0, n_block(c, n))),      # src_corr
            ],
            out_specs=pl.BlockSpec((tb, 128), lambda b, c, n: (b, c)),
        ),
        compiler_params=pltpu.CompilerParams(
            dimension_semantics=("parallel", "parallel", "arbitrary"),
            vmem_limit_bytes=32 * 1024 * 1024),
        cost_estimate=cost,
    )(params, src_k, src_corr)

    # Tiny combine in plain JAX. NOTE: slice to :B BEFORE reducing so that any
    # NaN/Inf from padded batch rows never enters the result.
    sums = jnp.sum(out[:B], axis=-1)                 # per-batch sum of exp_error
    mean_exp = sums / N
    beta = 1.0 / (1.0 - jnp.exp(-inv_2sig2))
    return jnp.mean((1.0 - mean_exp) * beta)


def mcc_loss_ref(src_k, R_gt, t_gt, src_corr, sigma_):
    """Pure-JAX reference mirroring the PyTorch module."""
    B = R_gt.shape[0]
    sigma_ = sigma_.reshape(B, 1)
    beta = 1.0 / (1.0 - jnp.exp(-0.5 * sigma_ ** (-2)))
    src_gt = jnp.einsum("bij,bjn->bin", R_gt, src_k) + t_gt[:, :, None]
    error = jnp.sqrt(jnp.sum((src_corr - src_gt) ** 2, axis=1))   # (B, N)
    exp_error = jnp.exp(-(error * 0.5 * sigma_ ** (-2)))
    mcc = (-jnp.mean(exp_error, axis=-1) + 1.0) * beta[:, 0]
    return jnp.mean(mcc, axis=0)


if __name__ == "__main__":
    def make_inputs(key, B, N):
        k1, k2, k3, k4, k5 = jax.random.split(key, 5)
        src_k = jax.random.normal(k1, (B, 3, N), dtype=jnp.float32)
        R_gt = (jax.random.normal(k2, (B, 3, 3), dtype=jnp.float32) * 0.5
                + jnp.eye(3, dtype=jnp.float32)[None])
        t_gt = jax.random.normal(k3, (B, 3), dtype=jnp.float32)
        src_corr = jax.random.normal(k4, (B, 3, N), dtype=jnp.float32)
        sigma_ = jax.random.uniform(k5, (B,), dtype=jnp.float32,
                                    minval=0.5, maxval=1.5)
        return src_k, R_gt, t_gt, src_corr, sigma_

    root = jax.random.PRNGKey(0)
    # (B, N, tn_max) -- small shapes chosen to exercise every code path:
    cases = [
        (2, 128, 8192),   # single tile, tb = B, no masking
        (2, 600, 128),    # 2 parallel N chunks, odd tile count (clamped
                          # overflow tile) + ragged last tile masking
        (10, 200, 128),   # padded batch rows, partial last batch block,
                          # ragged last N tile, single chunk
        (16, 1024, 256),  # tb = 16, 2 even chunks, no masking
    ]
    for i, (B, N, tn_max) in enumerate(cases):
        args = make_inputs(jax.random.fold_in(root, i), B, N)
        got = jax.block_until_ready(mcc_loss_v2(*args, tn_max=tn_max))
        want = jax.block_until_ready(mcc_loss_ref(*args))
        assert jnp.allclose(got, want, rtol=1e-4, atol=1e-5), (i, got, want)

    print("KERNEL_OK")
</pallas_src>

<mosaic_0001>
module attributes {stable_mosaic.version = 11 : i64} {
  func.func @_mcc_kernel(%arg0: i32, %arg1: i32, %arg2: i32, %arg3: memref<2x16xf32, #tpu.memory_space<vmem>>, %arg4: memref<2x3x128xf32, #tpu.memory_space<vmem>>, %arg5: memref<2x3x128xf32, #tpu.memory_space<vmem>>, %arg6: memref<2x128xf32, #tpu.memory_space<vmem>>) attributes {dimension_semantics = [#tpu.dimension_semantics<parallel>, #tpu.dimension_semantics<parallel>, #tpu.dimension_semantics<arbitrary>], iteration_bounds = array<i64: 1, 1, 1>, scalar_prefetch = 0 : i64, scratch_operands = 0 : i64, tpu.core_type = #tpu.core_type<tc>, window_params = [{transform_indices = @transform_0, window_bounds = array<i64: 2, 16>}, {transform_indices = @transform_1, window_bounds = array<i64: 2, 3, 128>}, {transform_indices = @transform_2, window_bounds = array<i64: 2, 3, 128>}, {transform_indices = @transform_3, window_bounds = array<i64: 2, 128>}]} {
    %c0_i32 = arith.constant 0 : i32
    %0 = arith.cmpi eq, %arg2, %c0_i32 : i32
    %1 = arith.extui %0 : i1 to i32
    %c0_i32_0 = arith.constant 0 : i32
    %2 = arith.cmpi ne, %1, %c0_i32_0 : i32
    scf.if %2 {
      %cst = arith.constant 0.000000e+00 : f32
      %102 = vector.broadcast %cst : f32 to vector<2x128xf32>
      %c0_12 = arith.constant 0 : index
      %c0_13 = arith.constant 0 : index
      %103 = vector.load %arg6[%c0_12, %c0_13] : memref<2x128xf32, #tpu.memory_space<vmem>>, vector<2x128xf32>
      tpu.vector_store %arg6[%c0_12, %c0_13], %102 {strides = array<i32>} : memref<2x128xf32, #tpu.memory_space<vmem>>, vector<2x128xf32>,
    } else {
    }
    %c0 = arith.constant 0 : index
    %c0_1 = arith.constant 0 : index
    %3 = vector.load %arg3[%c0, %c0_1] : memref<2x16xf32, #tpu.memory_space<vmem>>, vector<2x16xf32>
    %c0_2 = arith.constant 0 : index
    %c0_3 = arith.constant 0 : index
    %c0_4 = arith.constant 0 : index
    %4 = vector.load %arg4[%c0_2, %c0_3, %c0_4] : memref<2x3x128xf32, #tpu.memory_space<vmem>>, vector<2x3x128xf32>
    %c0_5 = arith.constant 0 : index
    %c0_6 = arith.constant 0 : index
    %c0_7 = arith.constant 0 : index
    %5 = vector.load %arg5[%c0_5, %c0_6, %c0_7] : memref<2x3x128xf32, #tpu.memory_space<vmem>>, vector<2x3x128xf32>
    %6 = vector.extract_strided_slice %4 {offsets = [0, 0, 0], sizes = [2, 1, 128], strides = [1, 1, 1]} : vector<2x3x128xf32> to vector<2x1x128xf32>
    %7 = vector.shape_cast %6 : vector<2x1x128xf32> to vector<2x128xf32>
    %8 = vector.extract_strided_slice %4 {offsets = [0, 1, 0], sizes = [2, 1, 128], strides = [1, 1, 1]} : vector<2x3x128xf32> to vector<2x1x128xf32>
    %9 = vector.shape_cast %8 : vector<2x1x128xf32> to vector<2x128xf32>
    %10 = vector.extract_strided_slice %4 {offsets = [0, 2, 0], sizes = [2, 1, 128], strides = [1, 1, 1]} : vector<2x3x128xf32> to vector<2x1x128xf32>
    %11 = vector.shape_cast %10 : vector<2x1x128xf32> to vector<2x128xf32>
    %12 = vector.extract_strided_slice %3 {offsets = [0, 0], sizes = [2, 1], strides = [1, 1]} : vector<2x16xf32> to vector<2x1xf32>
    %13 = vector.shape_cast %12 : vector<2x1xf32> to vector<2xf32>
    %14 = vector.shape_cast %13 : vector<2xf32> to vector<2x1xf32>
    %15 = vector.broadcast %14 : vector<2x1xf32> to vector<2x128xf32>
    %16 = arith.mulf %15, %7 : vector<2x128xf32>
    %17 = vector.extract_strided_slice %3 {offsets = [0, 1], sizes = [2, 1], strides = [1, 1]} : vector<2x16xf32> to vector<2x1xf32>
    %18 = vector.shape_cast %17 : vector<2x1xf32> to vector<2xf32>
    %19 = vector.shape_cast %18 : vector<2xf32> to vector<2x1xf32>
    %20 = vector.broadcast %19 : vector<2x1xf32> to vector<2x128xf32>
    %21 = arith.mulf %20, %9 : vector<2x128xf32>
    %22 = arith.addf %16, %21 : vector<2x128xf32>
    %23 = vector.extract_strided_slice %3 {offsets = [0, 2], sizes = [2, 1], strides = [1, 1]} : vector<2x16xf32> to vector<2x1xf32>
    %24 = vector.shape_cast %23 : vector<2x1xf32> to vector<2xf32>
    %25 = vector.shape_cast %24 : vector<2xf32> to vector<2x1xf32>
    %26 = vector.broadcast %25 : vector<2x1xf32> to vector<2x128xf32>
    %27 = arith.mulf %26, %11 : vector<2x128xf32>
    %28 = arith.addf %22, %27 : vector<2x128xf32>
    %29 = vector.extract_strided_slice %3 {offsets = [0, 9], sizes = [2, 1], strides = [1, 1]} : vector<2x16xf32> to vector<2x1xf32>
    %30 = vector.shape_cast %29 : vector<2x1xf32> to vector<2xf32>
    %31 = vector.shape_cast %30 : vector<2xf32> to vector<2x1xf32>
    %32 = vector.broadcast %31 : vector<2x1xf32> to vector<2x128xf32>
    %33 = arith.addf %28, %32 : vector<2x128xf32>
    %34 = vector.extract_strided_slice %5 {offsets = [0, 0, 0], sizes = [2, 1, 128], strides = [1, 1, 1]} : vector<2x3x128xf32> to vector<2x1x128xf32>
    %35 = vector.shape_cast %34 : vector<2x1x128xf32> to vector<2x128xf32>
    %36 = arith.subf %35, %33 : vector<2x128xf32>
    %37 = arith.mulf %36, %36 : vector<2x128xf32>
    %38 = vector.extract_strided_slice %3 {offsets = [0, 3], sizes = [2, 1], strides = [1, 1]} : vector<2x16xf32> to vector<2x1xf32>
    %39 = vector.shape_cast %38 : vector<2x1xf32> to vector<2xf32>
    %40 = vector.shape_cast %39 : vector<2xf32> to vector<2x1xf32>
    %41 = vector.broadcast %40 : vector<2x1xf32> to vector<2x128xf32>
    %42 = arith.mulf %41, %7 : vector<2x128xf32>
    %43 = vector.extract_strided_slice %3 {offsets = [0, 4], sizes = [2, 1], strides = [1, 1]} : vector<2x16xf32> to vector<2x1xf32>
    %44 = vector.shape_cast %43 : vector<2x1xf32> to vector<2xf32>
    %45 = vector.shape_cast %44 : vector<2xf32> to vector<2x1xf32>
    %46 = vector.broadcast %45 : vector<2x1xf32> to vector<2x128xf32>
    %47 = arith.mulf %46, %9 : vector<2x128xf32>
    %48 = arith.addf %42, %47 : vector<2x128xf32>
    %49 = vector.extract_strided_slice %3 {offsets = [0, 5], sizes = [2, 1], strides = [1, 1]} : vector<2x16xf32> to vector<2x1xf32>
    %50 = vector.shape_cast %49 : vector<2x1xf32> to vector<2xf32>
    %51 = vector.shape_cast %50 : vector<2xf32> to vector<2x1xf32>
    %52 = vector.broadcast %51 : vector<2x1xf32> to vector<2x128xf32>
    %53 = arith.mulf %52, %11 : vector<2x128xf32>
    %54 = arith.addf %48, %53 : vector<2x128xf32>
    %55 = vector.extract_strided_slice %3 {offsets = [0, 10], sizes = [2, 1], strides = [1, 1]} : vector<2x16xf32> to vector<2x1xf32>
    %56 = vector.shape_cast %55 : vector<2x1xf32> to vector<2xf32>
    %57 = vector.shape_cast %56 : vector<2xf32> to vector<2x1xf32>
    %58 = vector.broadcast %57 : vector<2x1xf32> to vector<2x128xf32>
    %59 = arith.addf %54, %58 : vector<2x128xf32>
    %60 = vector.extract_strided_slice %5 {offsets = [0, 1, 0], sizes = [2, 1, 128], strides = [1, 1, 1]} : vector<2x3x128xf32> to vector<2x1x128xf32>
    %61 = vector.shape_cast %60 : vector<2x1x128xf32> to vector<2x128xf32>
    %62 = arith.subf %61, %59 : vector<2x128xf32>
    %63 = arith.mulf %62, %62 : vector<2x128xf32>
    %64 = arith.addf %37, %63 : vector<2x128xf32>
    %65 = vector.extract_strided_slice %3 {offsets = [0, 6], sizes = [2, 1], strides = [1, 1]} : vector<2x16xf32> to vector<2x1xf32>
    %66 = vector.shape_cast %65 : vector<2x1xf32> to vector<2xf32>
    %67 = vector.shape_cast %66 : vector<2xf32> to vector<2x1xf32>
    %68 = vector.broadcast %67 : vector<2x1xf32> to vector<2x128xf32>
    %69 = arith.mulf %68, %7 : vector<2x128xf32>
    %70 = vector.extract_strided_slice %3 {offsets = [0, 7], sizes = [2, 1], strides = [1, 1]} : vector<2x16xf32> to vector<2x1xf32>
    %71 = vector.shape_cast %70 : vector<2x1xf32> to vector<2xf32>
    %72 = vector.shape_cast %71 : vector<2xf32> to vector<2x1xf32>
    %73 = vector.broadcast %72 : vector<2x1xf32> to vector<2x128xf32>
    %74 = arith.mulf %73, %9 : vector<2x128xf32>
    %75 = arith.addf %69, %74 : vector<2x128xf32>
    %76 = vector.extract_strided_slice %3 {offsets = [0, 8], sizes = [2, 1], strides = [1, 1]} : vector<2x16xf32> to vector<2x1xf32>
    %77 = vector.shape_cast %76 : vector<2x1xf32> to vector<2xf32>
    %78 = vector.shape_cast %77 : vector<2xf32> to vector<2x1xf32>
    %79 = vector.broadcast %78 : vector<2x1xf32> to vector<2x128xf32>
    %80 = arith.mulf %79, %11 : vector<2x128xf32>
    %81 = arith.addf %75, %80 : vector<2x128xf32>
    %82 = vector.extract_strided_slice %3 {offsets = [0, 11], sizes = [2, 1], strides = [1, 1]} : vector<2x16xf32> to vector<2x1xf32>
    %83 = vector.shape_cast %82 : vector<2x1xf32> to vector<2xf32>
    %84 = vector.shape_cast %83 : vector<2xf32> to vector<2x1xf32>
    %85 = vector.broadcast %84 : vector<2x1xf32> to vector<2x128xf32>
    %86 = arith.addf %81, %85 : vector<2x128xf32>
    %87 = vector.extract_strided_slice %5 {offsets = [0, 2, 0], sizes = [2, 1, 128], strides = [1, 1, 1]} : vector<2x3x128xf32> to vector<2x1x128xf32>
    %88 = vector.shape_cast %87 : vector<2x1x128xf32> to vector<2x128xf32>
    %89 = arith.subf %88, %86 : vector<2x128xf32>
    %90 = arith.mulf %89, %89 : vector<2x128xf32>
    %91 = arith.addf %64, %90 : vector<2x128xf32>
    %92 = math.sqrt %91 : vector<2x128xf32>
    %93 = vector.extract_strided_slice %3 {offsets = [0, 12], sizes = [2, 1], strides = [1, 1]} : vector<2x16xf32> to vector<2x1xf32>
    %94 = vector.shape_cast %93 : vector<2x1xf32> to vector<2xf32>
    %95 = vector.shape_cast %94 : vector<2xf32> to vector<2x1xf32>
    %96 = vector.broadcast %95 : vector<2x1xf32> to vector<2x128xf32>
    %97 = arith.mulf %92, %96 : vector<2x128xf32>
    %98 = math.exp %97 : vector<2x128xf32>
    %c0_8 = arith.constant 0 : index
    %c0_9 = arith.constant 0 : index
    %99 = vector.load %arg6[%c0_8, %c0_9] : memref<2x128xf32, #tpu.memory_space<vmem>>, vector<2x128xf32>
    %100 = arith.addf %99, %98 : vector<2x128xf32>
    %c0_10 = arith.constant 0 : index
    %c0_11 = arith.constant 0 : index
    %101 = vector.load %arg6[%c0_10, %c0_11] : memref<2x128xf32, #tpu.memory_space<vmem>>, vector<2x128xf32>
    tpu.vector_store %arg6[%c0_10, %c0_11], %100 {strides = array<i32>} : memref<2x128xf32, #tpu.memory_space<vmem>>, vector<2x128xf32>,
    return
  }
  func.func @transform_0(%arg0: i32, %arg1: i32, %arg2: i32) -> (i32, i32) {
    %c0_i32 = arith.constant 0 : i32
    %c0_i32_0 = arith.constant 0 : i32
    return %arg0, %c0_i32 : i32, i32
  }
  func.func @transform_1(%arg0: i32, %arg1: i32, %arg2: i32) -> (i32, i32, i32) {
    %c1_i32 = arith.constant 1 : i32
    %0 = arith.muli %arg1, %c1_i32 : i32
    %1 = arith.addi %0, %arg2 : i32
    %c0_i32 = arith.constant 0 : i32
    %c0_i32_0 = arith.constant 0 : i32
    return %arg0, %c0_i32, %1 : i32, i32, i32
  }
  func.func @transform_2(%arg0: i32, %arg1: i32, %arg2: i32) -> (i32, i32, i32) {
    %c1_i32 = arith.constant 1 : i32
    %0 = arith.muli %arg1, %c1_i32 : i32
    %1 = arith.addi %0, %arg2 : i32
    %c0_i32 = arith.constant 0 : i32
    %c0_i32_0 = arith.constant 0 : i32
    return %arg0, %c0_i32, %1 : i32, i32, i32
  }
  func.func @transform_3(%arg0: i32, %arg1: i32, %arg2: i32) -> (i32, i32) {
    %c0_i32 = arith.constant 0 : i32
    return %arg0, %arg1 : i32, i32
  }
}

</mosaic_0001>

<llo_original>
// kernel: mcc_loss_v2.1
$region0: #{mcc_loss_v2.1}
  #allocation0 [shape = 'u32[]', space=smem, size = 0x4, offset = 0x4, fixed_abs, tag = 'smem constant byte address 0x4 - core index']
  #allocation1 [shape = 'u32[144,128]{1,0:T(1,128)}', space=vmem, size = 0x12000, scoped, tag = 'internal scratch']
  %s0 = inlined_call_operand.vmem [shape: f32[2,16], index: 0, kind: input, shape index: {}]
  %s1 = inlined_call_operand.vmem [shape: f32[2,3,128], index: 1, kind: input, shape index: {}]
  %s2 = inlined_call_operand.vmem [shape: f32[2,3,128], index: 2, kind: input, shape index: {}]
  %s3 = inlined_call_operand.vmem [shape: f32[2,128], index: 3, kind: output, shape index: {}]
  %s4 = sld [smem:[#allocation0]]
  $region26: #{mcc_loss_v2.1} parent=0
    _
  %s6 = ssub.s32 1, %s4
  %s7 = scalar_select 0, %s6, %s4
  // Predicated region
  $region2: #{mcc_loss_v2.1} parent=0 // pred_check
    _
  $region3: #{mcc_loss_v2.1} parent=0 // pred_check_branch
    %9 = sbr.rel (0) target = $region5
  $region4: #{mcc_loss_v2.1} parent=0 // pred_region
    _
  $region5: #{mcc_loss_v2.1} parent=0 // pred_fallthru
    _
  // Predicated region
  $region6: #{mcc_loss_v2.1} parent=0 // pred_check
    _
  $region7: #{mcc_loss_v2.1} parent=0 // pred_check_branch
    %11 = sbr.rel (0) target = $region9
  $region8: #{mcc_loss_v2.1} parent=0 // pred_region
    %s12 = sadd.s32 0, 0
    %p13 = scmp.lt.s32.totalorder %s12, 0
    %s14 = scalar_select %p13, %s12, 0
    %s15 = smul.addr %s14, 4
    %s16 = scalar_lea.vmem %s1, %s15
    %s17 = sadd.s32 0, 0
  $region9: #{mcc_loss_v2.1} parent=0 // pred_fallthru
    _
  // Predicated region
  $region10: #{mcc_loss_v2.1} parent=0 // pred_check
    _
  $region11: #{mcc_loss_v2.1} parent=0 // pred_check_branch
    %19 = sbr.rel (0) target = $region13
  $region12: #{mcc_loss_v2.1} parent=0 // pred_region
    %s20 = sadd.s32 0, 0
    %p21 = scmp.lt.s32.totalorder %s20, 0
    %s22 = scalar_select %p21, %s20, 0
    %s23 = smul.addr %s22, 4
    %s24 = scalar_lea.vmem %s2, %s23
    %s25 = sadd.s32 0, 0
  $region13: #{mcc_loss_v2.1} parent=0 // pred_fallthru
    _
  %s26 = sadd.s32 0, 0
  %p27 = scmp.lt.s32.totalorder %s26, 0
  %s28 = scalar_select %p27, %s26, 0
  %s29 = smul.addr %s28, 4
  %s30 = scalar_lea.vmem %s1, %s29
  %s31 = sadd.s32 0, 0
  %p32 = scmp.lt.s32.totalorder %s31, 0
  %s33 = scalar_select %p32, %s31, 0
  %s34 = smul.addr %s33, 4
  %s35 = scalar_lea.vmem %s2, %s34
  %s36 = sadd.s32 0, 0
  %p37 = scmp.lt.s32.totalorder %s36, 0
  %s38 = scalar_select %p37, %s36, 0
  %s39 = smul.addr %s38, 4
  %s40 = scalar_lea.vmem %s1, %s39
  %s41 = sadd.s32 0, 0
  %s42 = sadd.s32 0, 0
  %p43 = scmp.lt.s32.totalorder %s42, 0
  %s44 = scalar_select %p43, %s42, 0
  %s45 = smul.addr %s44, 4
  %s46 = scalar_lea.vmem %s2, %s45
  %s47 = sadd.s32 0, 0
  %p48 = scmp.eq.s32.totalorder 0, 0
  // Predicated region
  $region14: #{mcc_loss_v2.1} parent=0 // pred_check
    %p49 = pneg %p48
  $region15: #{mcc_loss_v2.1} parent=0 // pred_check_branch
    %51 = sbr.rel (%p49) target = $region17
  $region16: #{mcc_loss_v2.1} parent=0 // pred_region
    %52 = vst [vmem:[%s3] sm:$0x3] 0.0
  $region17: #{mcc_loss_v2.1} parent=0 // pred_fallthru
    _
  %v53 = vld [vmem:[%s0] sm:$0x3]
  %v54 = vld [vmem:[%s40] sm:$0x7]
  %v55 = vld [vmem:[%s40 + $0x4] sm:$0x7]
  %v56 = vld [vmem:[%s46] sm:$0x7]
  %v57 = vld [vmem:[%s46 + $0x4] sm:$0x7]
  %59 = vset.pattern.permute.xlu0 0
  %60 = vperm.xlu0 %59, %v53
  %v61 = vpop.permute.xlu0 %60
  %v65 = vrot.slane %v55, 7
  %vm66 = vcmask 1041409
  %v67 = vsel %vm66, %v65, %v54
  %v69 = vmul.f32 %v61, %v67
  %70 = vset.pattern.permute.xlu0 1
  %71 = vperm.xlu0 %70, %v53
  %v72 = vpop.permute.xlu0 %71
  %v74 = vrot.slane %v54, 1
  %v75 = vsel %vm66, %v55, %v74
  %v77 = vmul.f32 %v72, %v75
  %v78 = vadd.f32 %v69, %v77
  %79 = vset.pattern.permute.xlu0 2
  %80 = vperm.xlu0 %79, %v53
  %v81 = vpop.permute.xlu0 %80
  %v83 = vrot.slane %v54, 2
  %v84 = vrot.slane %v55, 1
  %v85 = vsel %vm66, %v84, %v83
  %v87 = vmul.f32 %v81, %v85
  %v88 = vadd.f32 %v78, %v87
  %89 = vset.pattern.permute.xlu0 9
  %90 = vperm.xlu0 %89, %v53
  %v91 = vpop.permute.xlu0 %90
  %v93 = vadd.f32 %v88, %v91
  %v95 = vrot.slane %v93, 1
  %v98 = vsub.f32 %v56, %v93
  %v99 = vsub.f32 %v57, %v95
  %v100 = vmul.f32 %v98, %v98
  %v101 = vmul.f32 %v99, %v99
  %102 = vset.pattern.permute.xlu0 3
  %103 = vperm.xlu0 %102, %v53
  %v104 = vpop.permute.xlu0 %103
  %v106 = vmul.f32 %v104, %v67
  %107 = vset.pattern.permute.xlu0 4
  %108 = vperm.xlu0 %107, %v53
  %v109 = vpop.permute.xlu0 %108
  %v111 = vmul.f32 %v109, %v75
  %v112 = vadd.f32 %v106, %v111
  %113 = vset.pattern.permute.xlu0 5
  %114 = vperm.xlu0 %113, %v53
  %v115 = vpop.permute.xlu0 %114
  %v117 = vmul.f32 %v115, %v85
  %v118 = vadd.f32 %v112, %v117
  %119 = vset.pattern.permute.xlu0 10
  %120 = vperm.xlu0 %119, %v53
  %v121 = vpop.permute.xlu0 %120
  %v123 = vadd.f32 %v118, %v121
  %v125 = vrot.slane %v123, 7
  %v128 = vsub.f32 %v56, %v125
  %v129 = vsub.f32 %v57, %v123
  %v130 = vmul.f32 %v128, %v128
  %v131 = vmul.f32 %v129, %v129
  %v134 = vrot.slane %v130, 1
  %v135 = vrot.slane %v131, 1
  %v138 = vadd.f32 %v100, %v134
  %v139 = vadd.f32 %v101, %v135
  %140 = vset.pattern.permute.xlu0 6
  %141 = vperm.xlu0 %140, %v53
  %v142 = vpop.permute.xlu0 %141
  %v144 = vmul.f32 %v142, %v67
  %145 = vset.pattern.permute.xlu0 7
  %146 = vperm.xlu0 %145, %v53
  %v147 = vpop.permute.xlu0 %146
  %v149 = vmul.f32 %v147, %v75
  %v150 = vadd.f32 %v144, %v149
  %151 = vset.pattern.permute.xlu0 8
  %152 = vperm.xlu0 %151, %v53
  %v153 = vpop.permute.xlu0 %152
  %v155 = vmul.f32 %v153, %v85
  %v156 = vadd.f32 %v150, %v155
  %157 = vset.pattern.permute.xlu0 11
  %158 = vperm.xlu0 %157, %v53
  %v159 = vpop.permute.xlu0 %158
  %v161 = vadd.f32 %v156, %v159
  %v163 = vrot.slane %v161, 6
  %v164 = vrot.slane %v161, 7
  %v167 = vsub.f32 %v56, %v163
  %v168 = vsub.f32 %v57, %v164
  %v169 = vmul.f32 %v167, %v167
  %v170 = vmul.f32 %v168, %v168
  %v173 = vrot.slane %v169, 2
  %v174 = vrot.slane %v170, 2
  %v177 = vadd.f32 %v138, %v173
  %v178 = vadd.f32 %v139, %v174
  %v179 = vrsqrt.pop %v177
  %v180 = vmul.f32 %v177, %v179
  %vm181 = vcmp.eq.f32.partialorder %v177, inf
  %v182 = vsel %vm181, %v177, %v180
  %vm183 = vcmp.eq.f32.partialorder %v177, 0.0
  %v184 = vand.u32 %v177, 2147483648
  %v185 = vsel %vm183, %v184, %v182
  %v186 = vrsqrt.pop %v178
  %v187 = vmul.f32 %v178, %v186
  %vm188 = vcmp.eq.f32.partialorder %v178, inf
  %v189 = vsel %vm188, %v178, %v187
  %vm190 = vcmp.eq.f32.partialorder %v178, 0.0
  %v191 = vand.u32 %v178, 2147483648
  %v192 = vsel %vm190, %v191, %v189
  %193 = vset.pattern.permute.xlu0 12
  %194 = vperm.xlu0 %193, %v53
  %v195 = vpop.permute.xlu0 %194
  %v196 = vrot.slane %v195, 1
  %v199 = vmul.f32 %v185, %v195
  %v200 = vmul.f32 %v192, %v196
  %v201 = vmul.f32 %v199, 1.442695
  %v202 = vpow.pop %v201
  %v203 = vmul.f32 %v200, 1.442695
  %v204 = vpow.pop %v203
  %v205 = vld [vmem:[%s3] sm:$0x3]
  %v208 = vrot.slane %v204, 7
  %v209 = vsel %vm66, %v208, %v202
  %v211 = vadd.f32 %v205, %v209
  %212 = vst [vmem:[%s3] sm:$0x3] %v211
  // Predicated region
  $region18: #{mcc_loss_v2.1} parent=0 // pred_check
    _
  $region19: #{mcc_loss_v2.1} parent=0 // pred_check_branch
    %214 = sbr.rel (0) target = $region21
  $region20: #{mcc_loss_v2.1} parent=0 // pred_region
    _
  $region21: #{mcc_loss_v2.1} parent=0 // pred_fallthru
    _
  // Predicated region
  $region22: #{mcc_loss_v2.1} parent=0 // pred_check
    _
  $region23: #{mcc_loss_v2.1} parent=0 // pred_check_branch
    %216 = sbr.rel (0) target = $region25
  $region24: #{mcc_loss_v2.1} parent=0 // pred_region
    _
  $region25: #{mcc_loss_v2.1} parent=0 // pred_fallthru
    _

</llo_original>
